<compile_context>
chip_gen: v6e
topology: v6e:2x2x1
jax: 0.10.0
libtpu: 0.0.40
codegen_flags: <defaults>
</compile_context>

<pallas_src>
import jax
import jax.numpy as jnp
from jax.experimental import pallas as pl
from jax.experimental.pallas import tpu as pltpu


# ----------------------------------------------------------------------------- helpers
def _round_up(x, m):
    return ((x + m - 1) // m) * m


def _vmem_capacity_bytes():
    """Physical VMEM of the current TPU generation (fallback: 64 MiB, the
    smallest per-TensorCore VMEM across v5e/v6e/v7x)."""
    try:
        info = pltpu.get_tpu_info()
        cap = int(getattr(info, "vmem_capacity_bytes", 0) or 0)
        if cap > 0:
            return cap
    except Exception:
        pass
    return 64 << 20


def _num_tensorcores():
    """Best-effort TensorCores-per-chip (1 on v5e/v6e, 2 on v7x)."""
    try:
        info = pltpu.get_tpu_info()
        for name in ("num_cores", "tensorcore_count", "num_tensorcores"):
            n = getattr(info, name, None)
            if n:
                return int(n)
    except Exception:
        pass
    try:
        dev = jax.devices()[0]
        for name in ("num_cores", "core_count"):
            n = getattr(dev, name, None)
            if n:
                return int(n)
    except Exception:
        pass
    return 1


def _block_vmem_bytes(b_blk, t_pad, h):
    """Conservative VMEM footprint of one pipelined grid step: padded
    (8, 128) layouts, double-buffered streamed blocks, plus the in-kernel
    tanh(Wx) and x*a temporaries and the resident weights."""
    f32 = 4
    hp = _round_up(h, 128)
    x_blk = b_blk * t_pad * hp * f32                                # inputs block
    z_blk = x_blk                                                   # z output block
    row_blk = _round_up(b_blk, 8) * _round_up(t_pad, 128) * f32     # mask / a blocks
    h_tmp = _round_up(b_blk * t_pad, 8) * hp * f32                  # tanh(Wx)
    z_tmp = x_blk                                                   # x * a before store
    weights = (_round_up(h, 8) * hp + 2 * hp + 128) * f32
    return 2 * (x_blk + row_blk) + 2 * (z_blk + row_blk) + h_tmp + z_tmp + 2 * weights


def _pick_batch_block(b, t_pad, h, vmem_budget, min_grid):
    """Largest divisor of b whose working set fits the VMEM budget; only on
    multi-TensorCore parts do we then shrink to expose >= min_grid steps."""
    best = 1
    for d in range(1, b + 1):
        if b % d:
            continue
        if _block_vmem_bytes(d, t_pad, h) <= vmem_budget:
            best = d
    if min_grid > 1 and b // best < min_grid:
        for d in range(best - 1, 0, -1):
            if b % d == 0 and b // d >= min_grid:
                best = d
                break
    return best


# ----------------------------------------------------------------------------- kernel
def attention_kernel(x_ref, m_ref, wt_ref, b_ref, v_ref, vb_ref, z_ref, a_ref):
    # x_ref : (B_blk, T, H)     m_ref : (B_blk, T)
    # wt_ref: (H, H) = W.weight.T   b_ref : (1, H)
    # v_ref : (1, H) = v.weight     vb_ref: (1, 1) = v.bias
    # z_ref : (B_blk, T, H)     a_ref : (B_blk, T)
    b_blk, t, h = x_ref.shape

    x = x_ref[...]                                  # (B_blk, T, H) f32
    m = m_ref[...]                                  # (B_blk, T)    f32

    # --- W projection + tanh, fused over B_blk*T rows (fills the MXU M dim).
    #     T % 8 == 0 (wrapper pads), so both reshapes are pure layout views.
    x2 = x.reshape(b_blk * t, h)
    hidden = jnp.tanh(
        jnp.dot(x2, wt_ref[...], preferred_element_type=jnp.float32) + b_ref[...]
    )                                               # (B_blk*T, H)
    h3 = hidden.reshape(b_blk, t, h)                # (B_blk, T, H)

    # --- v projection: VPU multiply + XLU lane reduce (no N=1 MXU pass).
    u = jnp.sum(h3 * v_ref[...], axis=-1) + vb_ref[...]      # (B_blk, T)

    # --- exp / mask / normalise, identical to the reference for any mask.
    #     Subtracting the per-row max is a pure shift that cancels in the ratio.
    c = jnp.max(u, axis=-1, keepdims=True)
    e = jnp.exp(u - c) * m                                    # (B_blk, T)
    s = jnp.sum(e, axis=-1, keepdims=True)                    # (B_blk, 1)
    inv = pl.reciprocal(s, approx=True)                       # EUP vrcp
    inv = inv * (2.0 - s * inv)                               # Newton -> f32 accuracy
    a = e * inv

    z_ref[...] = (x * a[:, :, None]).astype(z_ref.dtype)      # one small XLU relayout for a
    a_ref[...] = a.astype(a_ref.dtype)


# ----------------------------------------------------------------------------- wrapper
def attention_forward(inputs, mask, W_w, W_b, v_w, v_b):
    """inputs: (B, T, H) float32, mask: (B, T) (any dtype, cast to float).
       W_w: (H, H) [out, in], W_b: (H,), v_w: (1, H), v_b: (1,).
       Returns (z (B, T, H), a (B, T)) matching the PyTorch module."""
    B, T, H = inputs.shape

    # Pad T to a multiple of 8 so the in-kernel reshapes are pure views.
    T_pad = max(_round_up(T, 8), 8)
    x = inputs.astype(jnp.float32)
    m = mask.astype(jnp.float32)
    if T_pad != T:
        x = jnp.pad(x, ((0, 0), (0, T_pad - T), (0, 0)))
        m = jnp.pad(m, ((0, 0), (0, T_pad - T)))   # zero mask -> no contribution

    wt = W_w.T.astype(jnp.float32)                 # (H, H)
    b = W_b.reshape(1, H).astype(jnp.float32)      # (1, H)
    v_row = v_w.reshape(1, H).astype(jnp.float32)  # (1, H)
    vb = v_b.reshape(1, 1).astype(jnp.float32)     # (1, 1)

    vmem_cap = _vmem_capacity_bytes()
    n_cores = _num_tensorcores()
    B_blk = _pick_batch_block(B, T_pad, H,
                              vmem_budget=int(0.5 * vmem_cap),
                              min_grid=n_cores)
    nb = B // B_blk

    need = _block_vmem_bytes(B_blk, T_pad, H)
    vmem_limit = int(min(max(need + (8 << 20), 32 << 20), int(0.9 * vmem_cap)))
    vmem_limit = max(vmem_limit, 16 << 20)

    z, a = pl.pallas_call(
        attention_kernel,
        out_shape=(
            jax.ShapeDtypeStruct((B, T_pad, H), inputs.dtype),
            jax.ShapeDtypeStruct((B, T_pad), jnp.float32),
        ),
        grid_spec=pltpu.PrefetchScalarGridSpec(
            num_scalar_prefetch=0,
            grid=(nb,),
            in_specs=[
                pl.BlockSpec((B_blk, T_pad, H), lambda i: (i, 0, 0)),  # inputs
                pl.BlockSpec((B_blk, T_pad), lambda i: (i, 0)),        # mask
                pl.BlockSpec((H, H), lambda i: (0, 0)),                # W.T  (resident)
                pl.BlockSpec((1, H), lambda i: (0, 0)),                # W bias
                pl.BlockSpec((1, H), lambda i: (0, 0)),                # v row
                pl.BlockSpec((1, 1), lambda i: (0, 0)),                # v bias
            ],
            out_specs=[
                pl.BlockSpec((B_blk, T_pad, H), lambda i: (i, 0, 0)),  # z
                pl.BlockSpec((B_blk, T_pad), lambda i: (i, 0)),        # a
            ],
        ),
        compiler_params=pltpu.CompilerParams(
            dimension_semantics=("parallel",),
            vmem_limit_bytes=vmem_limit,
        ),
    )(x, m, wt, b, v_row, vb)

    if T_pad != T:
        z = z[:, :T]
        a = a[:, :T]
    return z, a


# ----------------------------------------------------------------------------- reference
def attention_ref(inputs, mask, W_w, W_b, v_w, v_b):
    """Pure-JAX reference mirroring the PyTorch forward."""
    h = jnp.tanh(jnp.einsum("bth,oh->bto", inputs, W_w) + W_b)
    u = jnp.einsum("bth,oh->bto", h, v_w) + v_b          # (B, T, 1)
    u = jnp.exp(u)
    u = mask.astype(jnp.float32)[..., None] * u
    sums = jnp.sum(u, axis=1, keepdims=True)
    a = u / sums
    z = inputs * a
    return z, a.reshape(inputs.shape[0], inputs.shape[1])


if __name__ == "__main__":
    B, T, H = 2, 8, 32

    key = jax.random.PRNGKey(0)
    k_x, k_w, k_wb, k_v, k_vb, k_m = jax.random.split(key, 6)

    inputs = jax.random.normal(k_x, (B, T, H), dtype=jnp.float32)
    # deterministic "Linear" parameters (shapes per nn.Linear(H, H), nn.Linear(H, 1))
    W_w = jax.random.normal(k_w, (H, H), dtype=jnp.float32) * 0.1
    W_b = jax.random.normal(k_wb, (H,), dtype=jnp.float32) * 0.1
    v_w = jax.random.normal(k_v, (1, H), dtype=jnp.float32) * 0.1
    v_b = jax.random.normal(k_vb, (1,), dtype=jnp.float32) * 0.1
    # binary mask with some padded positions; at least one valid position per row
    mask = (jax.random.uniform(k_m, (B, T)) > 0.25).astype(jnp.float32)
    mask = mask.at[:, 0].set(1.0)

    z, a = attention_forward(inputs, mask, W_w, W_b, v_w, v_b)
    jax.block_until_ready((z, a))

    z_ref, a_ref = attention_ref(inputs, mask, W_w, W_b, v_w, v_b)
    assert jnp.allclose(z, z_ref, atol=1e-5, rtol=1e-5), "z mismatch"
    assert jnp.allclose(a, a_ref, atol=1e-5, rtol=1e-5), "a mismatch"

    print("KERNEL_OK")
</pallas_src>

<mosaic_0001>
module attributes {stable_mosaic.version = 11 : i64} {
  func.func @attention_kernel(%arg0: i32, %arg1: memref<2x8x32xf32, #tpu.memory_space<vmem>>, %arg2: memref<2x8xf32, #tpu.memory_space<vmem>>, %arg3: memref<32x32xf32, #tpu.memory_space<vmem>>, %arg4: memref<1x32xf32, #tpu.memory_space<vmem>>, %arg5: memref<1x32xf32, #tpu.memory_space<vmem>>, %arg6: memref<1x1xf32, #tpu.memory_space<vmem>>, %arg7: memref<2x8x32xf32, #tpu.memory_space<vmem>>, %arg8: memref<2x8xf32, #tpu.memory_space<vmem>>) attributes {dimension_semantics = [#tpu.dimension_semantics<parallel>], iteration_bounds = array<i64: 1>, scalar_prefetch = 0 : i64, scratch_operands = 0 : i64, tpu.core_type = #tpu.core_type<tc>, window_params = [{transform_indices = @transform_0, window_bounds = array<i64: 2, 8, 32>}, {transform_indices = @transform_1, window_bounds = array<i64: 2, 8>}, {pipeline_mode = #tpu.pipeline_mode<synchronous>, transform_indices = @transform_2, window_bounds = array<i64: 32, 32>}, {pipeline_mode = #tpu.pipeline_mode<synchronous>, transform_indices = @transform_3, window_bounds = array<i64: 1, 32>}, {pipeline_mode = #tpu.pipeline_mode<synchronous>, transform_indices = @transform_4, window_bounds = array<i64: 1, 32>}, {pipeline_mode = #tpu.pipeline_mode<synchronous>, transform_indices = @transform_5, window_bounds = array<i64: 1, 1>}, {transform_indices = @transform_6, window_bounds = array<i64: 2, 8, 32>}, {transform_indices = @transform_7, window_bounds = array<i64: 2, 8>}]} {
    %c0 = arith.constant 0 : index
    %c0_0 = arith.constant 0 : index
    %c0_1 = arith.constant 0 : index
    %0 = vector.load %arg1[%c0, %c0_0, %c0_1] : memref<2x8x32xf32, #tpu.memory_space<vmem>>, vector<2x8x32xf32>
    %c0_2 = arith.constant 0 : index
    %c0_3 = arith.constant 0 : index
    %1 = vector.load %arg2[%c0_2, %c0_3] : memref<2x8xf32, #tpu.memory_space<vmem>>, vector<2x8xf32>
    %2 = vector.shape_cast %0 : vector<2x8x32xf32> to vector<16x32xf32>
    %c0_4 = arith.constant 0 : index
    %c0_5 = arith.constant 0 : index
    %3 = vector.load %arg3[%c0_4, %c0_5] : memref<32x32xf32, #tpu.memory_space<vmem>>, vector<32x32xf32>
    %cst = arith.constant dense<0.000000e+00> : vector<16x32xf32>
    %4 = tpu.matmul %2, %3, %cst {dimension_numbers = #tpu.dot_dimension_numbers<[1], [0], [0], [1], [0, 0, 1, 1], [], []>} : vector<16x32xf32>, vector<32x32xf32>, vector<16x32xf32> -> vector<16x32xf32>
    %c0_6 = arith.constant 0 : index
    %c0_7 = arith.constant 0 : index
    %5 = vector.load %arg4[%c0_6, %c0_7] : memref<1x32xf32, #tpu.memory_space<vmem>>, vector<1x32xf32>
    %6 = vector.broadcast %5 : vector<1x32xf32> to vector<16x32xf32>
    %7 = arith.addf %4, %6 : vector<16x32xf32>
    %8 = math.tanh %7 : vector<16x32xf32>
    %9 = vector.shape_cast %8 : vector<16x32xf32> to vector<2x8x32xf32>
    %c0_8 = arith.constant 0 : index
    %c0_9 = arith.constant 0 : index
    %10 = vector.load %arg5[%c0_8, %c0_9] : memref<1x32xf32, #tpu.memory_space<vmem>>, vector<1x32xf32>
    %11 = vector.shape_cast %10 : vector<1x32xf32> to vector<1x1x32xf32>
    %12 = vector.broadcast %11 : vector<1x1x32xf32> to vector<2x8x32xf32>
    %13 = arith.mulf %9, %12 : vector<2x8x32xf32>
    %cst_10 = arith.constant dense<0.000000e+00> : vector<2x8xf32>
    %14 = vector.multi_reduction <add>, %13, %cst_10 [2] : vector<2x8x32xf32> to vector<2x8xf32>
    %c0_11 = arith.constant 0 : index
    %c0_12 = arith.constant 0 : index
    %15 = vector.load %arg6[%c0_11, %c0_12] : memref<1x1xf32, #tpu.memory_space<vmem>>, vector<1x1xf32>
    %16 = vector.broadcast %15 : vector<1x1xf32> to vector<2x8xf32>
    %17 = arith.addf %14, %16 : vector<2x8xf32>
    %cst_13 = arith.constant dense<0xFF800000> : vector<2xf32>
    %18 = vector.multi_reduction <maximumf>, %17, %cst_13 [1] : vector<2x8xf32> to vector<2xf32>
    %19 = vector.shape_cast %18 : vector<2xf32> to vector<2x1xf32>
    %20 = vector.broadcast %19 : vector<2x1xf32> to vector<2x8xf32>
    %21 = arith.subf %17, %20 : vector<2x8xf32>
    %22 = math.exp %21 : vector<2x8xf32>
    %23 = arith.mulf %22, %1 : vector<2x8xf32>
    %cst_14 = arith.constant dense<0.000000e+00> : vector<2xf32>
    %24 = vector.multi_reduction <add>, %23, %cst_14 [1] : vector<2x8xf32> to vector<2xf32>
    %25 = vector.shape_cast %24 : vector<2xf32> to vector<2x1xf32>
    %26 = tpu.reciprocal %25 {approx = true} : vector<2x1xf32> -> vector<2x1xf32>
    %27 = arith.mulf %25, %26 : vector<2x1xf32>
    %cst_15 = arith.constant 2.000000e+00 : f32
    %28 = vector.broadcast %cst_15 : f32 to vector<2x1xf32>
    %29 = arith.subf %28, %27 : vector<2x1xf32>
    %30 = arith.mulf %26, %29 : vector<2x1xf32>
    %31 = vector.broadcast %30 : vector<2x1xf32> to vector<2x8xf32>
    %32 = arith.mulf %23, %31 : vector<2x8xf32>
    %33 = vector.shape_cast %32 : vector<2x8xf32> to vector<2x8x1xf32>
    %34 = vector.broadcast %33 : vector<2x8x1xf32> to vector<2x8x32xf32>
    %35 = arith.mulf %0, %34 : vector<2x8x32xf32>
    %c0_16 = arith.constant 0 : index
    %c0_17 = arith.constant 0 : index
    %c0_18 = arith.constant 0 : index
    %36 = vector.load %arg7[%c0_16, %c0_17, %c0_18] : memref<2x8x32xf32, #tpu.memory_space<vmem>>, vector<2x8x32xf32>
    tpu.vector_store %arg7[%c0_16, %c0_17, %c0_18], %35 {strides = array<i32>} : memref<2x8x32xf32, #tpu.memory_space<vmem>>, vector<2x8x32xf32>,
    %c0_19 = arith.constant 0 : index
    %c0_20 = arith.constant 0 : index
    %37 = vector.load %arg8[%c0_19, %c0_20] : memref<2x8xf32, #tpu.memory_space<vmem>>, vector<2x8xf32>
    tpu.vector_store %arg8[%c0_19, %c0_20], %32 {strides = array<i32>} : memref<2x8xf32, #tpu.memory_space<vmem>>, vector<2x8xf32>,
    return
  }
  func.func @transform_0(%arg0: i32) -> (i32, i32, i32) {
    %c0_i32 = arith.constant 0 : i32
    %c0_i32_0 = arith.constant 0 : i32
    %c0_i32_1 = arith.constant 0 : i32
    return %arg0, %c0_i32, %c0_i32_0 : i32, i32, i32
  }
  func.func @transform_1(%arg0: i32) -> (i32, i32) {
    %c0_i32 = arith.constant 0 : i32
    %c0_i32_0 = arith.constant 0 : i32
    return %arg0, %c0_i32 : i32, i32
  }
  func.func @transform_2(%arg0: i32) -> (i32, i32) {
    %c0_i32 = arith.constant 0 : i32
    %c0_i32_0 = arith.constant 0 : i32
    %c0_i32_1 = arith.constant 0 : i32
    return %c0_i32, %c0_i32_0 : i32, i32
  }
  func.func @transform_3(%arg0: i32) -> (i32, i32) {
    %c0_i32 = arith.constant 0 : i32
    %c0_i32_0 = arith.constant 0 : i32
    %c0_i32_1 = arith.constant 0 : i32
    return %c0_i32, %c0_i32_0 : i32, i32
  }
  func.func @transform_4(%arg0: i32) -> (i32, i32) {
    %c0_i32 = arith.constant 0 : i32
    %c0_i32_0 = arith.constant 0 : i32
    %c0_i32_1 = arith.constant 0 : i32
    return %c0_i32, %c0_i32_0 : i32, i32
  }
  func.func @transform_5(%arg0: i32) -> (i32, i32) {
    %c0_i32 = arith.constant 0 : i32
    %c0_i32_0 = arith.constant 0 : i32
    %c0_i32_1 = arith.constant 0 : i32
    return %c0_i32, %c0_i32_0 : i32, i32
  }
  func.func @transform_6(%arg0: i32) -> (i32, i32, i32) {
    %c0_i32 = arith.constant 0 : i32
    %c0_i32_0 = arith.constant 0 : i32
    %c0_i32_1 = arith.constant 0 : i32
    return %arg0, %c0_i32, %c0_i32_0 : i32, i32, i32
  }
  func.func @transform_7(%arg0: i32) -> (i32, i32) {
    %c0_i32 = arith.constant 0 : i32
    %c0_i32_0 = arith.constant 0 : i32
    return %arg0, %c0_i32 : i32, i32
  }
}

</mosaic_0001>

<llo_original>
// kernel: tpu_custom_call.1
$region0: #{tpu_custom_call.1}
  #allocation0 [shape = 'u32[]', space=smem, size = 0x4, offset = 0x4, fixed_abs, tag = 'smem constant byte address 0x4 - core index']
  #allocation1 [shape = 'u32[144,128]{1,0:T(1,128)}', space=vmem, size = 0x12000, scoped, tag = 'internal scratch']
  #allocation2 [shape = 'f32[1,1]{1,0:T(1,128)S(1)}', space=vmem, size = 0x200, scoped, tag = 'scoped memory for tpu_custom_call.1']
  %s0 = inlined_call_operand.hbm [shape: f32[2,8,32], index: 0, kind: input, shape index: {}]
  %s1 = inlined_call_operand.vmem [shape: f32[2,8], index: 1, kind: input, shape index: {}]
  %s2 = inlined_call_operand.hbm [shape: f32[32,32], index: 2, kind: input, shape index: {}]
  %s3 = inlined_call_operand.vmem [shape: f32[1,32], index: 3, kind: input, shape index: {}]
  %s4 = inlined_call_operand.vmem [shape: f32[1,32], index: 4, kind: input, shape index: {}]
  %s5 = inlined_call_operand.<no memory space> [shape: f32[1,1], index: 5, kind: input, shape index: {}]
  %s6 = inlined_call_operand.hbm [shape: f32[2,8,32], index: 6, kind: output, shape index: {0}]
  %s7 = inlined_call_operand.hbm [shape: f32[2,8], index: 7, kind: output, shape index: {1}]
  %8 = xla_tuple %s6, %s7
  %s9 = sld [smem:[#allocation0]]
  $region50: #{tpu_custom_call.1} parent=0
    _
  %s11 = ssub.s32 1, %s9
  %s12 = scalar_select 0, %s11, %s9
  %v13 = vstv %s5
  %14 = vst [vmem:[#allocation2] sm:$0x1] %v13
  $region1: #{tpu_custom_call.1} parent=0
    #allocation3 [shape = 'u8[8192]{0}', space=vmem, size = 0x2000, scoped, tag = 'input window, operand 0, single buffered']
    #allocation4 [shape = 's32[1]{0}', space=sflag, size = 0x4, scoped, tag = 'scoped memory for tpu_custom_call.1']
    #allocation5 [shape = 's32[1]{0}', space=sflag, size = 0x4, scoped, tag = 'scoped memory for tpu_custom_call.1']
    #allocation6 [shape = 'u8[16384]{0}', space=vmem, size = 0x4000, scoped, tag = 'input window, operand 2, single buffered']
    #allocation7 [shape = 's32[1]{0}', space=sflag, size = 0x4, scoped, tag = 'scoped memory for tpu_custom_call.1']
    #allocation8 [shape = 'u8[8192]{0}', space=vmem, size = 0x2000, scoped, tag = 'output window, operand 0, single buffered']
    #allocation9 [shape = 'u8[1024]{0}', space=vmem, size = 0x400, scoped, tag = 'output window, operand 1, single buffered']
    #allocation10 [shape = 's32[1]{0}', space=sflag, size = 0x4, scoped, tag = 'scoped memory for tpu_custom_call.1']
    %15 = vsyncpa [#allocation4], 0
    %16 = vsyncpa [#allocation7], 0
    %17 = vsyncpa [#allocation5], 0
    %18 = vsyncpa [#allocation10], 0
    // Predicated region
    $region2: #{tpu_custom_call.1} parent=1 // pred_check
      _
    $region3: #{tpu_custom_call.1} parent=1 // pred_check_branch
      %20 = sbr.rel (0) target = $region5
    $region4: #{tpu_custom_call.1} parent=1 // pred_region
      %s22 = ssub.s32 256, 256
      %23 = vsyncadd [#allocation4], %s22
      %s24 = sshll.u32 [#allocation3], 4
      %s25 = int_to_ptr.vmem [resolvable:$true] %s24
      %30 = dma.hbm_to_vmem [thread:$0]  %s0, 256, %s25, [#allocation4], 128, 128, 8
    $region5: #{tpu_custom_call.1} parent=1 // pred_fallthru
      _
    // Predicated region
    $region6: #{tpu_custom_call.1} parent=1 // pred_check
      _
    $region7: #{tpu_custom_call.1} parent=1 // pred_check_branch
      %32 = sbr.rel (0) target = $region9
    $region8: #{tpu_custom_call.1} parent=1 // pred_region
      _
    $region9: #{tpu_custom_call.1} parent=1 // pred_fallthru
      _
    // Predicated region
    $region10: #{tpu_custom_call.1} parent=1 // pred_check
      _
    $region11: #{tpu_custom_call.1} parent=1 // pred_check_branch
      %34 = sbr.rel (0) target = $region13
    $region12: #{tpu_custom_call.1} parent=1 // pred_region
      %s36 = ssub.s32 512, 512
      %37 = vsyncadd [#allocation7], %s36
      %s38 = sshll.u32 [#allocation6], 4
      %s39 = int_to_ptr.vmem [resolvable:$true] %s38
      %44 = dma.hbm_to_vmem [thread:$0]  %s2, 512, %s39, [#allocation7], 128, 128, 8
    $region13: #{tpu_custom_call.1} parent=1 // pred_fallthru
      _
    // Predicated region
    $region14: #{tpu_custom_call.1} parent=1 // pred_check
      _
    $region15: #{tpu_custom_call.1} parent=1 // pred_check_branch
      %46 = sbr.rel (0) target = $region17
    $region16: #{tpu_custom_call.1} parent=1 // pred_region
      _
    $region17: #{tpu_custom_call.1} parent=1 // pred_fallthru
      _
    // Predicated region
    $region18: #{tpu_custom_call.1} parent=1 // pred_check
      _
    $region19: #{tpu_custom_call.1} parent=1 // pred_check_branch
      %48 = sbr.rel (0) target = $region21
    $region20: #{tpu_custom_call.1} parent=1 // pred_region
      _
    $region21: #{tpu_custom_call.1} parent=1 // pred_fallthru
      _
    // Predicated region
    $region22: #{tpu_custom_call.1} parent=1 // pred_check
      _
    $region23: #{tpu_custom_call.1} parent=1 // pred_check_branch
      %50 = sbr.rel (0) target = $region25
    $region24: #{tpu_custom_call.1} parent=1 // pred_region
      _
    $region25: #{tpu_custom_call.1} parent=1 // pred_fallthru
      _
    // Predicated region
    $region26: #{tpu_custom_call.1} parent=1 // pred_check
      _
    $region27: #{tpu_custom_call.1} parent=1 // pred_check_branch
      %52 = sbr.rel (0) target = $region29
    $region28: #{tpu_custom_call.1} parent=1 // pred_region
      %53 = dma.done [#allocation4], 256
    $region29: #{tpu_custom_call.1} parent=1 // pred_fallthru
      _
    // Predicated region
    $region30: #{tpu_custom_call.1} parent=1 // pred_check
      _
    $region31: #{tpu_custom_call.1} parent=1 // pred_check_branch
      %55 = sbr.rel (0) target = $region33
    $region32: #{tpu_custom_call.1} parent=1 // pred_region
      %56 = dma.done [#allocation7], 512
    $region33: #{tpu_custom_call.1} parent=1 // pred_fallthru
      _
    %v57 = vld [vmem:[#allocation3] sm:$0xff]
    %v58 = vld [vmem:[#allocation3 + $0x8] sm:$0xff]
    %v59 = vld [vmem:[%s1] sm:$0x3]
    %v60 = vld [vmem:[#allocation6] sm:$0xff]
    %v61 = vld [vmem:[#allocation6 + $0x8] sm:$0xff]
    %v62 = vld [vmem:[#allocation6 + $0x10] sm:$0xff]
    %v63 = vld [vmem:[#allocation6 + $0x18] sm:$0xff]
    %v64 = vld [vmem:[%s3] sm:$0x1]
    %v66 = vlaneseq
    %v67 = vshrl.u32 %v66, 7
    %v68 = vsub.s32 0, %v67
    %v69 = vrot.slane %v64, %v68
    %vm71 = vcmask 261120
    %v73 = vsel %vm71, %v57, 0
    %v76 = vsel %vm71, %v58, 0
    %78 = vmatprep.subr.mxu0 0.0
    %79 = vmatpush1.msra.mxu0 0.0
    %80 = vmatprep.subr.mxu0 0.0
    %81 = vmatpush1.msra.mxu0 0.0
    %82 = vmatprep.subr.mxu0 0.0
    %83 = vmatpush1.msra.mxu0 0.0
    %84 = vmatprep.subr.mxu0 0.0
    %85 = vmatpush1.msra.mxu0 0.0
    %86 = vmatprep.subr.mxu0 0.0
    %87 = vmatpush1.msra.mxu0 0.0
    %88 = vmatprep.subr.mxu0 0.0
    %89 = vmatpush1.msra.mxu0 0.0
    %90 = vmatprep.subr.mxu0 0.0
    %91 = vmatpush1.msra.mxu0 0.0
    %92 = vmatprep.subr.mxu0 0.0
    %93 = vmatpush1.msra.mxu0 0.0
    %94 = vmatprep.subr.mxu0 0.0
    %95 = vmatpush1.msra.mxu0 0.0
    %96 = vmatprep.subr.mxu0 0.0
    %97 = vmatpush1.msra.mxu0 0.0
    %98 = vmatprep.subr.mxu0 0.0
    %99 = vmatpush1.msra.mxu0 0.0
    %100 = vmatprep.subr.mxu0 0.0
    %101 = vmatpush1.msra.mxu0 0.0
    %102 = vmatprep.subr.mxu0 0.0
    %103 = vmatpush1.msra.mxu0 %v63
    %104 = vmatprep.subr.mxu0 0.0
    %105 = vmatpush1.msra.mxu0 %v62
    %106 = vmatprep.subr.mxu0 0.0
    %107 = vmatpush1.msra.mxu0 %v61
    %108 = vmatprep.subr.mxu0 0.0
    %109 = vmatpush1.msra.mxu0 %v60
    %110 = vmatprep.subr.mxu0 0.0
    %111 = vmatpush2.msra.mxu0 0.0
    %112 = vmatprep.subr.mxu0 0.0
    %113 = vmatpush2.msra.mxu0 0.0
    %114 = vmatprep.subr.mxu0 0.0
    %115 = vmatpush2.msra.mxu0 0.0
    %116 = vmatprep.subr.mxu0 0.0
    %117 = vmatpush2.msra.mxu0 0.0
    %118 = vmatprep.subr.mxu0 0.0
    %119 = vmatpush2.msra.mxu0 0.0
    %120 = vmatprep.subr.mxu0 0.0
    %121 = vmatpush2.msra.mxu0 0.0
    %122 = vmatprep.subr.mxu0 0.0
    %123 = vmatpush2.msra.mxu0 0.0
    %124 = vmatprep.subr.mxu0 0.0
    %125 = vmatpush2.msra.mxu0 0.0
    %126 = vmatprep.subr.mxu0 0.0
    %127 = vmatpush2.msra.mxu0 0.0
    %128 = vmatprep.subr.mxu0 0.0
    %129 = vmatpush2.msra.mxu0 0.0
    %130 = vmatprep.subr.mxu0 0.0
    %131 = vmatpush2.msra.mxu0 0.0
    %132 = vmatprep.subr.mxu0 0.0
    %133 = vmatpush2.msra.mxu0 0.0
    %134 = vmatprep.subr.mxu0 0.0
    %135 = vmatpush2.msra.mxu0 0.0
    %136 = vmatprep.subr.mxu0 0.0
    %137 = vmatpush2.msra.mxu0 0.0
    %138 = vmatprep.subr.mxu0 0.0
    %139 = vmatpush2.msra.mxu0 0.0
    %140 = vmatprep.subr.mxu0 0.0
    %141 = vmatpush2.msra.mxu0 0.0
    %142 = vmatprep.mubr.f32.mxu0 0.0
    %143 = vmatmul.mubr.f32.gmra.mxu0 %v73
    %v144 = vpop.f32.mrf.mxu0
    %v145 = vadd.f32 %v69, %v144
    %v146 = vpop.f32.mrf.mxu0
    %147 = vmatprep.mubr.f32.mxu0 0.0
    %148 = vmatmul.mubr.f32.gmra.mxu0 %v76
    %v149 = vpop.f32.mrf.mxu0
    %v150 = vadd.f32 %v69, %v149
    %v151 = vpop.f32.mrf.mxu0
    %152 = vdwg.mxu0
    %v153 = vtanh.pop %v145
    %v154 = vtanh.pop %v150
    %v155 = vld [vmem:[%s4] sm:$0x1]
    %v157 = vlaneseq
    %v158 = vshrl.u32 %v157, 7
    %v159 = vsub.s32 0, %v158
    %v160 = vrot.slane %v155, %v159
    %v162 = vmul.f32 %v153, %v160
    %v163 = vmul.f32 %v154, %v160
    %v164 = vsel %vm71, %v162, 0.0
    %165 = vadd.xlane.f32.xlu0 %v164
    %v166 = vpop.xlane.xlu0 %165
    %v167 = vsel %vm71, %v163, 0.0
    %168 = vadd.xlane.f32.xlu0 %v167
    %v169 = vpop.xlane.xlu0 %168
    %v170 = vld [vmem:[#allocation2] sm:$0x1]
    %v172 = vlaneseq
    %v173 = vshrl.u32 %v172, 7
    %v174 = vsub.s32 0, %v173
    %v175 = vrot.slane %v170, %v174
    %176 = vset.pattern.permute.xlu0 0
    %177 = vperm.xlu0 %176, %v175
    %v178 = vpop.permute.xlu0 %177
    %v180 = vadd.f32 %v166, %v178
    %v181 = vadd.f32 %v169, %v178
    %v184 = vlaneseq
    %v185 = vand.u32 %v184, 127
    %v186 = vlaneseq
    %v187 = vshrl.u32 %v186, 7
    %v188 = vsub.s32 %v185, %v187
    %v189 = vrot.slane %v180, %v188
    %v190 = vlaneseq
    %v191 = vshrl.u32 %v190, 7
    %v192 = vsub.s32 %v185, %v191
    %v193 = vrot.slane %v181, %v192
    %vm194 = vcmask 1041409
    %v195 = vsel %vm194, %v193, %v189
    %vm197 = vcmask 58368
    %v198 = vsel %vm197, %v195, -inf
    %199 = vmax.xlane.f32.xlu0 %v198
    %v200 = vpop.xlane.xlu0 %199
    %v202 = vlaneseq
    %v203 = vshrl.u32 %v202, 7
    %v204 = vsub.s32 0, %v203
    %v205 = vrot.slane %v200, %v204
    %v206 = vlaneseq
    %v207 = vshrl.u32 %v206, 7
    %v208 = vsub.s32 1, %v207
    %v209 = vrot.slane %v200, %v208
    %v212 = vsub.f32 %v180, %v205
    %v213 = vsub.f32 %v181, %v209
    %v214 = vmul.f32 %v212, 1.442695
    %v215 = vpow.pop %v214
    %v216 = vmul.f32 %v213, 1.442695
    %v217 = vpow.pop %v216
    %v219 = vlaneseq
    %v220 = vshrl.u32 %v219, 7
    %v221 = vsub.s32 0, %v220
    %v222 = vrot.slane %v59, %v221
    %224 = vbcast.lane.b32.xlu0 %v222, 256
    %v225 = vpop.permute.xlu0 %224
    %v226 = vlaneseq
    %v227 = vshrl.u32 %v226, 7
    %v228 = vsub.s32 1, %v227
    %v229 = vrot.slane %v59, %v228
    %231 = vbcast.lane.b32.xlu0 %v229, 256
    %v232 = vpop.permute.xlu0 %231
    %v235 = vmul.f32 %v215, %v225
    %v236 = vmul.f32 %v217, %v232
    %239 = vset.pattern.permute.xlu0 0
    %240 = vperm.xlu0 %239, %v235
    %v241 = vpop.permute.xlu0 %240
    %242 = vset.pattern.permute.xlu0 0
    %243 = vperm.xlu0 %242, %v236
    %v244 = vpop.permute.xlu0 %243
    %v245 = vlaneseq
    %v246 = vshrl.u32 %v245, 7
    %v247 = vsub.s32 %v185, %v246
    %v248 = vrot.slane %v241, %v247
    %v249 = vlaneseq
    %v250 = vshrl.u32 %v249, 7
    %v251 = vsub.s32 %v185, %v250
    %v252 = vrot.slane %v244, %v251
    %v253 = vsel %vm194, %v252, %v248
    %v255 = vsel %vm197, %v253, 0.0
    %256 = vadd.xlane.f32.xlu0 %v255
    %v257 = vpop.xlane.xlu0 %256
    %v258 = vrcp.pop %v257
    %v259 = vmul.f32 %v257, %v258
    %v260 = vsub.f32 2.0, %v259
    %v261 = vmul.f32 %v258, %v260
    %v263 = vlaneseq
    %v264 = vshrl.u32 %v263, 7
    %v265 = vsub.s32 0, %v264
    %v266 = vrot.slane %v261, %v265
    %v267 = vlaneseq
    %v268 = vshrl.u32 %v267, 7
    %v269 = vsub.s32 1, %v268
    %v270 = vrot.slane %v261, %v269
    %v273 = vmul.f32 %v235, %v266
    %v274 = vmul.f32 %v236, %v270
    %276 = vset.pattern.permute.xlu0 0
    %277 = vperm.xlu0 %276, %v273
    %v278 = vpop.permute.xlu0 %277
    %281 = vset.pattern.permute.xlu0 0
    %282 = vperm.xlu0 %281, %v274
    %v283 = vpop.permute.xlu0 %282
    %v285 = vmul.f32 %v57, %v278
    %v286 = vmul.f32 %v58, %v283
    %287 = vst.msk [vmem:[#allocation8] sm:$0xff] %vm71, %v285
    %288 = vst.msk [vmem:[#allocation8 + $0x8] sm:$0xff] %vm71, %v286
    %v289 = vlaneseq
    %v290 = vshrl.u32 %v289, 7
    %v291 = vsub.s32 %v185, %v290
    %v292 = vrot.slane %v278, %v291
    %v293 = vlaneseq
    %v294 = vshrl.u32 %v293, 7
    %v295 = vsub.s32 %v185, %v294
    %v296 = vrot.slane %v283, %v295
    %v297 = vsel %vm194, %v296, %v292
    %299 = vst.msk [vmem:[#allocation9] sm:$0x3] %vm197, %v297
    // Predicated region
    $region34: #{tpu_custom_call.1} parent=1 // pred_check
      _
    $region35: #{tpu_custom_call.1} parent=1 // pred_check_branch
      %301 = sbr.rel (0) target = $region37
    $region36: #{tpu_custom_call.1} parent=1 // pred_region
      %s303 = ssub.s32 256, 256
      %304 = vsyncadd [#allocation5], %s303
      %s305 = sshll.u32 [#allocation8], 4
      %s306 = int_to_ptr.vmem [resolvable:$true] %s305
      %311 = dma.vmem_to_hbm [thread:$0]  %s306, 256, %s6, [#allocation5], 128, 128, 8
    $region37: #{tpu_custom_call.1} parent=1 // pred_fallthru
      _
    // Predicated region
    $region38: #{tpu_custom_call.1} parent=1 // pred_check
      _
    $region39: #{tpu_custom_call.1} parent=1 // pred_check_branch
      %313 = sbr.rel (0) target = $region41
    $region40: #{tpu_custom_call.1} parent=1 // pred_region
      %s315 = ssub.s32 32, 32
      %316 = vsyncadd [#allocation10], %s315
      %s318 = sshll.u32 [#allocation9], 4
      %s319 = int_to_ptr.vmem [resolvable:$true] %s318
      %321 = dma.vmem_to_hbm [thread:$0]  %s319, 32, %s7, [#allocation10]
    $region41: #{tpu_custom_call.1} parent=1 // pred_fallthru
      _
    // Predicated region
    $region42: #{tpu_custom_call.1} parent=1 // pred_check
      _
    $region43: #{tpu_custom_call.1} parent=1 // pred_check_branch
      %323 = sbr.rel (0) target = $region45
    $region44: #{tpu_custom_call.1} parent=1 // pred_region
      %324 = dma.done [#allocation5], 256
    $region45: #{tpu_custom_call.1} parent=1 // pred_fallthru
      _
    // Predicated region
    $region46: #{tpu_custom_call.1} parent=1 // pred_check
      _
    $region47: #{tpu_custom_call.1} parent=1 // pred_check_branch
      %326 = sbr.rel (0) target = $region49
    $region48: #{tpu_custom_call.1} parent=1 // pred_region
      %327 = dma.done [#allocation10], 32
    $region49: #{tpu_custom_call.1} parent=1 // pred_fallthru
      _
    %328 = vsyncpa [#allocation4], 1
    %329 = vsyncpa [#allocation7], 1
    %330 = vsyncpa [#allocation5], 1
    %331 = vsyncpa [#allocation10], 1

</llo_original>
